<compile_context>
chip_gen: v7x
topology: tpu7x:2x2x1
jax: 0.10.0
libtpu: 0.0.40
codegen_flags: <defaults>
</compile_context>

<pallas_src>
import jax
import jax.numpy as jnp
from jax.experimental import pallas as pl
from jax.experimental.pallas import tpu as pltpu

_LANES = 128


def _round_up(v, m):
    return ((v + m - 1) // m) * m


def _cdiv(a, b):
    return (a + b - 1) // b


def _pick_block_rows(total_rows, max_rows, min_split_rows):
    """Rows per grid block: big enough to amortize the ~0.35us per-step
    overhead, small enough for double-buffered VMEM, and an even block count
    so v7x's two TensorCores get balanced work (harmless on v5e/v6e)."""
    blocks = _cdiv(total_rows, max_rows)
    if total_rows >= 2 * min_split_rows:
        blocks = max(blocks, 2)
        blocks += blocks % 2          # even -> balanced across 2 TCs on v7x
    if blocks <= 1:
        return total_rows             # single full-array block (always legal)
    return _round_up(_cdiv(total_rows, blocks), 8)


def _dense_kernel(x_ref, wbd_ref, b_ref, o_ref):
    # x_ref:   (tb, 128) lane-dense tile; each row packs 128//D samples.
    # wbd_ref: (128, per_row) block-diagonal weight, VMEM-resident.
    # b_ref:   (1,) SMEM scalar bias.
    # o_ref:   (tb, per_row) logits; sample s = per_row*row + col.
    z = jnp.dot(x_ref[...], wbd_ref[...], preferred_element_type=jnp.float32)
    o_ref[...] = (z + b_ref[0]).astype(o_ref.dtype)


def _rowmajor_kernel(x_ref, w_ref, b_ref, o_ref):
    # Fallback: x_ref (tm, D), w_ref (1, D) resident, o_ref (1, tm) lane-dense.
    # Contract on dim 1 of both operands (no transposes materialized).
    z = jax.lax.dot_general(
        w_ref[...],
        x_ref[...],
        dimension_numbers=(((1,), (1,)), ((), ())),
        preferred_element_type=jnp.float32,
    )
    o_ref[...] = (z + b_ref[0]).astype(o_ref.dtype)


def logistic_regression_fair_forward(x, weight, bias):
    """y = x @ weight.T + bias (raw logits).

    x: (N, D) f32, weight: (1, D) f32 (native nn.Linear layout), bias: (1,) f32.
    Returns (N, 1) f32.
    """
    n, d = x.shape
    compiler_params = pltpu.CompilerParams(
        dimension_semantics=("parallel",),       # shard rows across TCs on v7x
        vmem_limit_bytes=32 * 1024 * 1024,        # actual usage stays ~<=17 MiB
    )

    dense_ok = (n > 0) and (d < _LANES) and (_LANES % d == 0) \
        and (n % (_LANES // d) == 0)

    if dense_ok:
        per_row = _LANES // d                     # samples packed per dense row
        rows = n // per_row
        # Free contiguous reshape: (N, D) -> (N/per_row, 128).
        x_dense = x.reshape(rows, _LANES)
        # (128, per_row) block-diagonal weight: w_bd[j*D + k, j] = weight[0, k].
        w_bd = (jnp.eye(per_row, dtype=x.dtype)[:, None, :]
                * weight[0][None, :, None]).reshape(_LANES, per_row)

        # tb=8192 dense rows -> x buffers 4 MiB, (tb, per_row) out buffers are
        # lane-padded to 4 MiB too: 16 MiB total double-buffered.
        tb = _pick_block_rows(rows, max_rows=8192, min_split_rows=512)
        grid = (_cdiv(rows, tb),)                 # ragged tail handled by Pallas

        out = pl.pallas_call(
            _dense_kernel,
            out_shape=jax.ShapeDtypeStruct((rows, per_row), x.dtype),
            grid=grid,
            in_specs=[
                pl.BlockSpec((tb, _LANES), lambda i: (i, 0)),          # x tiles
                pl.BlockSpec((_LANES, per_row), lambda i: (0, 0)),     # resident W
                pl.BlockSpec(memory_space=pltpu.MemorySpace.SMEM),     # bias
            ],
            out_specs=pl.BlockSpec((tb, per_row), lambda i: (i, 0)),
            compiler_params=compiler_params,
            cost_estimate=pl.CostEstimate(
                flops=2 * rows * _LANES * per_row,
                bytes_accessed=(n * d + n + _LANES * per_row + 1) * 4,
                transcendentals=0,
            ),
        )(x_dense, w_bd, bias)
        # Free contiguous reshape back: (N/per_row, per_row) -> (N, 1).
        return out.reshape(n, 1)

    # Generic fallback: native (N, D) blocks, lane-dense (1, tm) output.
    padded_row_bytes = _round_up(d, _LANES) * 4   # VMEM lane-pads the minor dim
    max_tm = max(512, ((8 * 1024 * 1024) // padded_row_bytes) // 8 * 8)
    tm = _pick_block_rows(n, max_rows=max_tm, min_split_rows=2048)
    grid = (_cdiv(n, tm),)                        # no jnp.pad; tail block ragged

    out = pl.pallas_call(
        _rowmajor_kernel,
        out_shape=jax.ShapeDtypeStruct((1, n), x.dtype),
        grid=grid,
        in_specs=[
            pl.BlockSpec((tm, d), lambda i: (i, 0)),               # x tiles
            pl.BlockSpec((1, d), lambda i: (0, 0)),                # resident W
            pl.BlockSpec(memory_space=pltpu.MemorySpace.SMEM),     # bias
        ],
        out_specs=pl.BlockSpec((1, tm), lambda i: (0, i)),         # lane-dense
        compiler_params=compiler_params,
        cost_estimate=pl.CostEstimate(
            flops=2 * n * d,
            bytes_accessed=(n * d + d + n + 1) * 4,
            transcendentals=0,
        ),
    )(x, weight, bias)
    return out.reshape(n, 1)


if __name__ == "__main__":
    key = jax.random.PRNGKey(0)
    k_x, k_w, k_b = jax.random.split(key, 3)

    batch = 8
    input_dim = 32

    # Synthetic "StandardScaler-ed" features.
    x = jax.random.normal(k_x, (batch, input_dim), dtype=jnp.float32)

    # nn.Linear default init (uniform +-1/sqrt(D)).
    bound = 1.0 / (input_dim ** 0.5)
    weight = jax.random.uniform(
        k_w, (1, input_dim), dtype=jnp.float32, minval=-bound, maxval=bound
    )
    bias = jax.random.uniform(
        k_b, (1,), dtype=jnp.float32, minval=-bound, maxval=bound
    )

    out = logistic_regression_fair_forward(x, weight, bias)
    out = jax.block_until_ready(out)
    ref = x @ weight.T + bias
    assert out.shape == (batch, 1)
    assert jnp.allclose(out, ref, atol=1e-5, rtol=1e-5)

    # Extra coverage: multi-block grid with a ragged trailing block (dense
    # path, exercises both v7x cores) and the generic fallback path.
    x_big = jax.random.normal(jax.random.PRNGKey(1), (20000, input_dim),
                              dtype=jnp.float32)
    out_big = jax.block_until_ready(
        logistic_regression_fair_forward(x_big, weight, bias))
    assert jnp.allclose(out_big, x_big @ weight.T + bias, atol=1e-4, rtol=1e-4)

    x_odd = x_big[:37]                            # N % 4 != 0 -> fallback path
    out_odd = jax.block_until_ready(
        logistic_regression_fair_forward(x_odd, weight, bias))
    assert jnp.allclose(out_odd, x_odd @ weight.T + bias, atol=1e-5, rtol=1e-5)

    print("KERNEL_OK")
</pallas_src>

<mosaic_0001>
module attributes {stable_mosaic.version = 11 : i64} {
  func.func @_dense_kernel(%arg0: i32, %arg1: memref<2x128xf32, #tpu.memory_space<vmem>>, %arg2: memref<128x4xf32, #tpu.memory_space<vmem>>, %arg3: memref<1xf32, #tpu.memory_space<smem>>, %arg4: memref<2x4xf32, #tpu.memory_space<vmem>>) attributes {dimension_semantics = [#tpu.dimension_semantics<parallel>], iteration_bounds = array<i64: 1>, scalar_prefetch = 0 : i64, scratch_operands = 0 : i64, tpu.core_type = #tpu.core_type<tc>, window_params = [{transform_indices = @transform_0, window_bounds = array<i64: 2, 128>}, {pipeline_mode = #tpu.pipeline_mode<synchronous>, transform_indices = @transform_1, window_bounds = array<i64: 128, 4>}, {transform_indices = @transform_2, window_bounds = array<i64: 1>}, {transform_indices = @transform_3, window_bounds = array<i64: 2, 4>}]} {
    %c0 = arith.constant 0 : index
    %c0_0 = arith.constant 0 : index
    %0 = vector.load %arg1[%c0, %c0_0] : memref<2x128xf32, #tpu.memory_space<vmem>>, vector<2x128xf32>
    %c0_1 = arith.constant 0 : index
    %c0_2 = arith.constant 0 : index
    %1 = vector.load %arg2[%c0_1, %c0_2] : memref<128x4xf32, #tpu.memory_space<vmem>>, vector<128x4xf32>
    %cst = arith.constant dense<0.000000e+00> : vector<2x4xf32>
    %2 = tpu.matmul %0, %1, %cst {dimension_numbers = #tpu.dot_dimension_numbers<[1], [0], [0], [1], [0, 0, 1, 1], [], []>} : vector<2x128xf32>, vector<128x4xf32>, vector<2x4xf32> -> vector<2x4xf32>
    %c0_3 = arith.constant 0 : index
    %3 = memref.load %arg3[%c0_3] : memref<1xf32, #tpu.memory_space<smem>>
    %4 = vector.broadcast %3 : f32 to vector<2x4xf32>
    %5 = arith.addf %2, %4 : vector<2x4xf32>
    %c0_4 = arith.constant 0 : index
    %c0_5 = arith.constant 0 : index
    %6 = vector.load %arg4[%c0_4, %c0_5] : memref<2x4xf32, #tpu.memory_space<vmem>>, vector<2x4xf32>
    tpu.vector_store %arg4[%c0_4, %c0_5], %5 {strides = array<i32>} : memref<2x4xf32, #tpu.memory_space<vmem>>, vector<2x4xf32>,
    return
  }
  func.func @transform_0(%arg0: i32) -> (i32, i32) {
    %c0_i32 = arith.constant 0 : i32
    %c0_i32_0 = arith.constant 0 : i32
    return %arg0, %c0_i32 : i32, i32
  }
  func.func @transform_1(%arg0: i32) -> (i32, i32) {
    %c0_i32 = arith.constant 0 : i32
    %c0_i32_0 = arith.constant 0 : i32
    %c0_i32_1 = arith.constant 0 : i32
    return %c0_i32, %c0_i32_0 : i32, i32
  }
  func.func @transform_2(%arg0: i32) -> i32 {
    %c0_i32 = arith.constant 0 : i32
    %c0_i32_0 = arith.constant 0 : i32
    return %c0_i32 : i32
  }
  func.func @transform_3(%arg0: i32) -> (i32, i32) {
    %c0_i32 = arith.constant 0 : i32
    %c0_i32_0 = arith.constant 0 : i32
    return %arg0, %c0_i32 : i32, i32
  }
}

</mosaic_0001>

<llo_original>
// kernel: tpu_custom_call.1
$region0: #{tpu_custom_call.1}
  #allocation0 [shape = 'u32[]', space=smem, size = 0x4, offset = 0x4, fixed_abs, tag = 'smem constant byte address 0x4 - core index']
  #allocation1 [shape = 'u32[144,128]{1,0:T(1,128)}', space=vmem, size = 0x12000, scoped, tag = 'internal scratch']
  #allocation2 [shape = 'f32[1]{0:T(128)S(6)}', space=smem, size = 0x200, scoped, tag = 'scoped memory for tpu_custom_call.1']
  %s0 = inlined_call_operand.vmem [shape: f32[2,128], index: 0, kind: input, shape index: {}]
  %s1 = inlined_call_operand.vmem [shape: f32[128,4], index: 1, kind: input, shape index: {}]
  %s2 = inlined_call_operand.<no memory space> [shape: f32[1], index: 2, kind: input, shape index: {}]
  %s3 = inlined_call_operand.hbm [shape: f32[2,4], index: 3, kind: output, shape index: {}]
  %s4 = sld [smem:[#allocation0]]
  $region22: #{tpu_custom_call.1} parent=0
    _
  %s6 = ssub.s32 1, %s4
  %s7 = scalar_select 0, %s6, %s4
  %8 = sst [smem:[#allocation2]] %s2
  $region1: #{tpu_custom_call.1} parent=0
    #allocation3 [shape = 'u8[1024]{0}', space=vmem, size = 0x400, scoped, tag = 'output window, operand 0, single buffered']
    #allocation4 [shape = 's32[1]{0}', space=sflag, size = 0x4, scoped, tag = 'scoped memory for tpu_custom_call.1']
    %9 = vsyncpa [#allocation4], 0
    // Predicated region
    $region2: #{tpu_custom_call.1} parent=1 // pred_check
      _
    $region3: #{tpu_custom_call.1} parent=1 // pred_check_branch
      %11 = sbr.rel (0) target = $region5
    $region4: #{tpu_custom_call.1} parent=1 // pred_region
      _
    $region5: #{tpu_custom_call.1} parent=1 // pred_fallthru
      _
    // Predicated region
    $region6: #{tpu_custom_call.1} parent=1 // pred_check
      _
    $region7: #{tpu_custom_call.1} parent=1 // pred_check_branch
      %13 = sbr.rel (0) target = $region9
    $region8: #{tpu_custom_call.1} parent=1 // pred_region
      _
    $region9: #{tpu_custom_call.1} parent=1 // pred_fallthru
      _
    // Predicated region
    $region10: #{tpu_custom_call.1} parent=1 // pred_check
      _
    $region11: #{tpu_custom_call.1} parent=1 // pred_check_branch
      %15 = sbr.rel (0) target = $region13
    $region12: #{tpu_custom_call.1} parent=1 // pred_region
      _
    $region13: #{tpu_custom_call.1} parent=1 // pred_fallthru
      _
    %v16 = vld [vmem:[%s0] sm:$0x3]
    %v17 = vld [vmem:[%s1] sm:$0xff]
    %v18 = vld [vmem:[%s1 + $0x8] sm:$0xff]
    %v19 = vld [vmem:[%s1 + $0x10] sm:$0xff]
    %v20 = vld [vmem:[%s1 + $0x18] sm:$0xff]
    %v21 = vld [vmem:[%s1 + $0x20] sm:$0xff]
    %v22 = vld [vmem:[%s1 + $0x28] sm:$0xff]
    %v23 = vld [vmem:[%s1 + $0x30] sm:$0xff]
    %v24 = vld [vmem:[%s1 + $0x38] sm:$0xff]
    %v25 = vld [vmem:[%s1 + $0x40] sm:$0xff]
    %v26 = vld [vmem:[%s1 + $0x48] sm:$0xff]
    %v27 = vld [vmem:[%s1 + $0x50] sm:$0xff]
    %v28 = vld [vmem:[%s1 + $0x58] sm:$0xff]
    %v29 = vld [vmem:[%s1 + $0x60] sm:$0xff]
    %v30 = vld [vmem:[%s1 + $0x68] sm:$0xff]
    %v31 = vld [vmem:[%s1 + $0x70] sm:$0xff]
    %v32 = vld [vmem:[%s1 + $0x78] sm:$0xff]
    %s33 = sld [smem:[#allocation2]]
    %v34 = vstv %s33
    %35 = vmatprep.subr.mxu0 0.0
    %36 = vmatpush1.msra.mxu0 %v17
    %37 = vmatprep.subr.mxu0 0.0
    %38 = vmatpush1.msra.mxu0 %v18
    %39 = vmatprep.subr.mxu0 0.0
    %40 = vmatpush1.msra.mxu0 %v19
    %41 = vmatprep.subr.mxu0 0.0
    %42 = vmatpush1.msra.mxu0 %v20
    %43 = vmatprep.subr.mxu0 0.0
    %44 = vmatpush1.msra.mxu0 %v21
    %45 = vmatprep.subr.mxu0 0.0
    %46 = vmatpush1.msra.mxu0 %v22
    %47 = vmatprep.subr.mxu0 0.0
    %48 = vmatpush1.msra.mxu0 %v23
    %49 = vmatprep.subr.mxu0 0.0
    %50 = vmatpush1.msra.mxu0 %v24
    %51 = vmatprep.subr.mxu0 0.0
    %52 = vmatpush1.msra.mxu0 %v25
    %53 = vmatprep.subr.mxu0 0.0
    %54 = vmatpush1.msra.mxu0 %v26
    %55 = vmatprep.subr.mxu0 0.0
    %56 = vmatpush1.msra.mxu0 %v27
    %57 = vmatprep.subr.mxu0 0.0
    %58 = vmatpush1.msra.mxu0 %v28
    %59 = vmatprep.subr.mxu0 0.0
    %60 = vmatpush1.msra.mxu0 %v29
    %61 = vmatprep.subr.mxu0 0.0
    %62 = vmatpush1.msra.mxu0 %v30
    %63 = vmatprep.subr.mxu0 0.0
    %64 = vmatpush1.msra.mxu0 %v31
    %65 = vmatprep.subr.mxu0 0.0
    %66 = vmatpush1.msra.mxu0 %v32
    %67 = vmatprep.subr.mxu0 0.0
    %68 = vmatpush1.msra.mxu0 0.0
    %69 = vmatprep.subr.mxu0 0.0
    %70 = vmatpush1.msra.mxu0 0.0
    %71 = vmatprep.subr.mxu0 0.0
    %72 = vmatpush1.msra.mxu0 0.0
    %73 = vmatprep.subr.mxu0 0.0
    %74 = vmatpush1.msra.mxu0 0.0
    %75 = vmatprep.subr.mxu0 0.0
    %76 = vmatpush1.msra.mxu0 0.0
    %77 = vmatprep.subr.mxu0 0.0
    %78 = vmatpush1.msra.mxu0 0.0
    %79 = vmatprep.subr.mxu0 0.0
    %80 = vmatpush1.msra.mxu0 0.0
    %81 = vmatprep.subr.mxu0 0.0
    %82 = vmatpush1.msra.mxu0 0.0
    %83 = vmatprep.subr.mxu0 0.0
    %84 = vmatpush1.msra.mxu0 0.0
    %85 = vmatprep.subr.mxu0 0.0
    %86 = vmatpush1.msra.mxu0 0.0
    %87 = vmatprep.subr.mxu0 0.0
    %88 = vmatpush1.msra.mxu0 0.0
    %89 = vmatprep.subr.mxu0 0.0
    %90 = vmatpush1.msra.mxu0 0.0
    %91 = vmatprep.subr.mxu0 0.0
    %92 = vmatpush1.msra.mxu0 0.0
    %93 = vmatprep.subr.mxu0 0.0
    %94 = vmatpush1.msra.mxu0 0.0
    %95 = vmatprep.subr.mxu0 0.0
    %96 = vmatpush1.msra.mxu0 0.0
    %97 = vmatprep.subr.mxu0 0.0
    %98 = vmatpush1.msra.mxu0 0.0
    %99 = vmatprep.mubr.f32.mxu0 0.0
    %100 = vmatmul.mubr.f32.gmra.mrb[0].mxu0 %v16
    %v101 = vpop.f32.mrb[0].mxu0
    %v102 = vadd.f32 %v34, %v101
    %v103 = vpop.f32.mrb[0].mxu0
    %104 = vdwg.mxu0
    %vm105 = vcmask 25600
    %106 = vst.msk [vmem:[#allocation3] sm:$0x3] %vm105, %v102
    // Predicated region
    $region14: #{tpu_custom_call.1} parent=1 // pred_check
      _
    $region15: #{tpu_custom_call.1} parent=1 // pred_check_branch
      %108 = sbr.rel (0) target = $region17
    $region16: #{tpu_custom_call.1} parent=1 // pred_region
      %s110 = ssub.s32 32, 32
      %111 = vsyncadd [#allocation4], %s110
      %s113 = sshll.u32 [#allocation3], 4
      %s114 = int_to_ptr.vmem [resolvable:$true] %s113
      %116 = dma.vmem_to_hbm [thread:$0]  %s114, 32, %s3, [#allocation4]
    $region17: #{tpu_custom_call.1} parent=1 // pred_fallthru
      _
    // Predicated region
    $region18: #{tpu_custom_call.1} parent=1 // pred_check
      _
    $region19: #{tpu_custom_call.1} parent=1 // pred_check_branch
      %118 = sbr.rel (0) target = $region21
    $region20: #{tpu_custom_call.1} parent=1 // pred_region
      %119 = dma.done [#allocation4], 32
    $region21: #{tpu_custom_call.1} parent=1 // pred_fallthru
      _
    %120 = vsyncpa [#allocation4], 1

</llo_original>
